<compile_context>
chip_gen: v5e
topology: v5e:2x2
jax: 0.10.0
libtpu: 0.0.40
codegen_flags: <defaults>
</compile_context>

<pallas_src>
import functools
import math

import jax
import jax.numpy as jnp
from jax.experimental import pallas as pl
from jax.experimental.pallas import tpu as pltpu


def _cdiv(a: int, b: int) -> int:
    return -(-a // b)


def _round_up(a: int, b: int) -> int:
    return _cdiv(a, b) * b


def _tpu_vmem_capacity_bytes() -> int:
    try:
        info = pltpu.get_tpu_info()
        cap = getattr(info, "vmem_capacity_bytes", None)
        if isinstance(cap, int) and cap > 0:
            return cap
    except Exception:
        pass
    return 64 * 1024 * 1024  # conservative: v7x per-TC VMEM


def _guess_num_tensorcores() -> int:
    # Best effort; if detection fails we assume 1 TC (v5e/v6e behavior).
    try:
        info = pltpu.get_tpu_info()
        for name in ("num_cores", "core_count", "tensorcore_count", "num_tensorcores"):
            v = getattr(info, name, None)
            if isinstance(v, int) and v > 0:
                return v
    except Exception:
        pass
    try:
        v = getattr(jax.devices()[0], "num_cores", None)
        if isinstance(v, int) and v > 0:
            return v
    except Exception:
        pass
    return 1


def _refined_reciprocal(denom):
    # EUP approx reciprocal (~2^-12 rel err, off the VALU critical path) plus
    # one Newton step (2 cheap VALU ops on a narrow column) -> ~f32 accuracy.
    inv = pl.reciprocal(denom, approx=True)
    return inv * (jnp.float32(2.0) - denom * inv)


def _layernorm_kernel(x_ref, a_ref, b_ref, o_ref, *, eps: float, features: int):
    # Generic path: lane axis == features.
    x = x_ref[...].astype(jnp.float32)
    n = jnp.float32(features)
    mean = jnp.sum(x, axis=-1, keepdims=True) / n
    d = x - mean                                   # two-pass: center before sum-sq
    var = jnp.sum(d * d, axis=-1, keepdims=True) / jnp.float32(features - 1)
    std = jnp.sqrt(var)
    inv = _refined_reciprocal(std + jnp.float32(eps))
    o_ref[...] = (a_ref[...] * (d * inv) + b_ref[...]).astype(o_ref.dtype)


def _layernorm_folded_kernel(x_ref, a_ref, b_ref, fold_ref, unfold_ref, o_ref,
                             *, eps: float, features: int):
    # Lane-folded path: each row holds k independent feature segments
    # (k * features == 128). Segment reductions/broadcasts use the MXU.
    x = x_ref[...].astype(jnp.float32)             # (bm, 128)
    fold = fold_ref[...]                           # (128, k), 0/1
    unfold = unfold_ref[...]                       # (k, 128), 0/1
    hi = jax.lax.Precision.HIGHEST                 # keep f32-accurate sums on MXU
    n = jnp.float32(features)

    s = jnp.dot(x, fold, precision=hi, preferred_element_type=jnp.float32)       # (bm, k)
    mean = s / n
    mean_b = jnp.dot(mean, unfold, precision=hi, preferred_element_type=jnp.float32)
    d = x - mean_b
    sq = jnp.dot(d * d, fold, precision=hi, preferred_element_type=jnp.float32)  # (bm, k)
    var = sq / jnp.float32(features - 1)
    std = jnp.sqrt(var)
    inv = _refined_reciprocal(std + jnp.float32(eps))
    inv_b = jnp.dot(inv, unfold, precision=hi, preferred_element_type=jnp.float32)
    o_ref[...] = (a_ref[...] * (d * inv_b) + b_ref[...]).astype(o_ref.dtype)


def layer_norm(
    x: jax.Array,
    a_2: jax.Array,
    b_2: jax.Array,
    eps: float = 1e-6,
    block_rows: int | None = None,
    target_block_bytes: int | None = None,
) -> jax.Array:
    orig_shape = x.shape
    features = orig_shape[-1]
    rows = 1
    for dim in orig_shape[:-1]:
        rows *= dim

    itemsize = jnp.dtype(x.dtype).itemsize
    sub_mult = 8 * max(1, 4 // itemsize)           # 8 f32 / 16 bf16 / 32 int8

    # Lane folding: pack k feature segments per 128-lane row when it divides 128.
    fold = features < 128 and (128 % features == 0)
    k = (128 // features) if fold else 1
    kf = k * features
    lane_width = kf

    # ---- VMEM / tile budget (chip aware) --------------------------------
    vmem_cap = _tpu_vmem_capacity_bytes()
    vmem_limit_bytes = int(min(64 << 20, max(32 << 20, vmem_cap // 2)))
    if target_block_bytes is None:
        # Smaller tiles on VMEM-lean chips (v7x: 64 MiB physical); bigger where
        # VMEM is plentiful (v5e/v6e: 128 MiB).
        target_block_bytes = (2 << 20) if vmem_cap <= (64 << 20) else (4 << 20)

    # Size tiles against the f32 working set: the kernel casts the whole block
    # to f32, so live VMEM per step is ~2x in + 2x out double-buffers plus
    # ~3 full f32 block temporaries.
    sizing_itemsize = max(itemsize, 4)

    # Guard: this kernel needs the whole (folded) feature axis in one block.
    min_live = sub_mult * lane_width * (4 * itemsize + 3 * 4)
    if min_live > vmem_limit_bytes:
        # TODO(synk): feature-tiled two-pass variant (second grid axis over
        # features marked "arbitrary", pl.when-init/finalize accumulators).
        raise ValueError(
            f"features={features} too wide for a single-block LayerNorm tile "
            f"(~{min_live} bytes of live VMEM needed, limit {vmem_limit_bytes}).")

    x2 = x.reshape(rows, features)
    if fold:
        rows_p = _round_up(rows, k)
        if rows_p != rows:
            x2 = jnp.pad(x2, ((0, rows_p - rows), (0, 0)))
        x2 = x2.reshape(rows_p // k, kf)           # contiguous reshape (free)
        rows_eff = rows_p // k
    else:
        rows_p = rows
        rows_eff = rows

    if block_rows is None:
        br = target_block_bytes // max(1, lane_width * sizing_itemsize)
        if br >= rows_eff:
            block_rows = rows_eff                  # one full-extent block
        else:
            block_rows = max(sub_mult, (br // sub_mult) * sub_mult)
        # v7x (2 TCs): ensure enough grid steps to shard across cores; 1-TC
        # chips keep the single big tile (extra steps cost ~0.35us each).
        num_cores = _guess_num_tensorcores()
        if num_cores > 1 and rows_eff > sub_mult:
            want_steps = 4 * num_cores
            cap = max(sub_mult, _round_up(_cdiv(rows_eff, want_steps), sub_mult))
            block_rows = min(block_rows, cap)
    block_rows = max(1, min(block_rows, rows_eff))

    grid = (_cdiv(rows_eff, block_rows),)

    # gamma/beta: cast + tile hoisted out of the kernel, VMEM-resident via
    # constant index_map.
    a2 = a_2.reshape(1, features).astype(jnp.float32)
    b2 = b_2.reshape(1, features).astype(jnp.float32)
    if fold:
        a2 = jnp.tile(a2, (1, k))
        b2 = jnp.tile(b2, (1, k))

    compiler_params = pltpu.CompilerParams(
        dimension_semantics=("parallel",),
        vmem_limit_bytes=vmem_limit_bytes,
    )

    if fold:
        seg = jnp.arange(kf, dtype=jnp.int32) // features
        fold_mat = (seg[:, None] == jnp.arange(k, dtype=jnp.int32)[None, :]).astype(jnp.float32)
        unfold_mat = fold_mat.T

        kernel = functools.partial(_layernorm_folded_kernel, eps=eps, features=features)
        out = pl.pallas_call(
            kernel,
            out_shape=jax.ShapeDtypeStruct((rows_eff, kf), x.dtype),
            grid_spec=pltpu.PrefetchScalarGridSpec(
                num_scalar_prefetch=0,
                grid=grid,
                in_specs=[
                    # If profiling ever shows exposed DMA on first/last steps,
                    # add pipeline_mode=pl.Buffered(3) here (cheap in VMEM).
                    pl.BlockSpec((block_rows, kf), lambda i: (i, 0)),
                    pl.BlockSpec((1, kf), lambda i: (0, 0)),
                    pl.BlockSpec((1, kf), lambda i: (0, 0)),
                    pl.BlockSpec((kf, k), lambda i: (0, 0)),
                    pl.BlockSpec((k, kf), lambda i: (0, 0)),
                ],
                out_specs=pl.BlockSpec((block_rows, kf), lambda i: (i, 0)),
            ),
            compiler_params=compiler_params,
        )(x2, a2, b2, fold_mat, unfold_mat)
        out = out.reshape(rows_p, features)[:rows]
    else:
        kernel = functools.partial(_layernorm_kernel, eps=eps, features=features)
        out = pl.pallas_call(
            kernel,
            out_shape=jax.ShapeDtypeStruct((rows, features), x.dtype),
            grid_spec=pltpu.PrefetchScalarGridSpec(
                num_scalar_prefetch=0,
                grid=grid,
                in_specs=[
                    pl.BlockSpec((block_rows, features), lambda i: (i, 0)),
                    pl.BlockSpec((1, features), lambda i: (0, 0)),
                    pl.BlockSpec((1, features), lambda i: (0, 0)),
                ],
                out_specs=pl.BlockSpec((block_rows, features), lambda i: (i, 0)),
            ),
            compiler_params=compiler_params,
        )(x2, a2, b2)

    return out.reshape(orig_shape)


def _reference_layer_norm(x, a_2, b_2, eps=1e-6):
    x32 = x.astype(jnp.float32)
    mean = jnp.mean(x32, axis=-1, keepdims=True)
    n = x.shape[-1]
    var = jnp.sum((x32 - mean) ** 2, axis=-1, keepdims=True) / (n - 1)
    std = jnp.sqrt(var)
    out = a_2.astype(jnp.float32) * (x32 - mean) / (std + eps) + b_2.astype(jnp.float32)
    return out.astype(x.dtype)


if __name__ == "__main__":
    key = jax.random.PRNGKey(0)
    batch, seq, hidden = 2, 8, 32

    k1, k2, k3 = jax.random.split(key, 3)
    # DC offset stresses the mean/variance numerics.
    x = jax.random.normal(k1, (batch, seq, hidden), dtype=jnp.float32) + 0.5
    a_2 = jnp.ones((hidden,), dtype=jnp.float32)   # mirrors torch.nn.Parameter(ones)
    b_2 = jnp.zeros((hidden,), dtype=jnp.float32)  # mirrors torch.nn.Parameter(zeros)

    out = jax.block_until_ready(layer_norm(x, a_2, b_2, eps=1e-6))
    ref = _reference_layer_norm(x, a_2, b_2, eps=1e-6)
    assert out.shape == x.shape
    assert jnp.allclose(out, ref, atol=1e-4, rtol=1e-4), "mismatch vs reference (folded path)"

    # Ragged case: 3*5=15 rows is not a multiple of the fold factor k=4.
    x_r = jax.random.normal(k2, (3, 5, hidden), dtype=jnp.float32)
    out_r = jax.block_until_ready(layer_norm(x_r, a_2, b_2, eps=1e-6))
    ref_r = _reference_layer_norm(x_r, a_2, b_2, eps=1e-6)
    assert out_r.shape == x_r.shape
    assert jnp.allclose(out_r, ref_r, atol=1e-4, rtol=1e-4), "ragged mismatch"

    # Generic (already lane-dense) path: features is a multiple of 128.
    hidden2 = 256
    x_w = jax.random.normal(k3, (4, 8, hidden2), dtype=jnp.float32) - 0.25
    a_w = jax.random.normal(jax.random.PRNGKey(1), (hidden2,), dtype=jnp.float32)
    b_w = jax.random.normal(jax.random.PRNGKey(2), (hidden2,), dtype=jnp.float32)
    out_w = jax.block_until_ready(layer_norm(x_w, a_w, b_w, eps=1e-6))
    ref_w = _reference_layer_norm(x_w, a_w, b_w, eps=1e-6)
    assert jnp.allclose(out_w, ref_w, atol=1e-4, rtol=1e-4), "mismatch vs reference (generic path)"

    print("KERNEL_OK")
</pallas_src>

<mosaic_0001>
module attributes {stable_mosaic.version = 11 : i64} {
  func.func @_layernorm_folded_kernel(%arg0: i32, %arg1: memref<4x128xf32, #tpu.memory_space<vmem>>, %arg2: memref<1x128xf32, #tpu.memory_space<vmem>>, %arg3: memref<1x128xf32, #tpu.memory_space<vmem>>, %arg4: memref<128x4xf32, #tpu.memory_space<vmem>>, %arg5: memref<4x128xf32, #tpu.memory_space<vmem>>, %arg6: memref<4x128xf32, #tpu.memory_space<vmem>>) attributes {dimension_semantics = [#tpu.dimension_semantics<parallel>], iteration_bounds = array<i64: 1>, scalar_prefetch = 0 : i64, scratch_operands = 0 : i64, tpu.core_type = #tpu.core_type<tc>, window_params = [{transform_indices = @transform_0, window_bounds = array<i64: 4, 128>}, {pipeline_mode = #tpu.pipeline_mode<synchronous>, transform_indices = @transform_1, window_bounds = array<i64: 1, 128>}, {pipeline_mode = #tpu.pipeline_mode<synchronous>, transform_indices = @transform_2, window_bounds = array<i64: 1, 128>}, {pipeline_mode = #tpu.pipeline_mode<synchronous>, transform_indices = @transform_3, window_bounds = array<i64: 128, 4>}, {pipeline_mode = #tpu.pipeline_mode<synchronous>, transform_indices = @transform_4, window_bounds = array<i64: 4, 128>}, {transform_indices = @transform_5, window_bounds = array<i64: 4, 128>}]} {
    %c0 = arith.constant 0 : index
    %c0_0 = arith.constant 0 : index
    %0 = vector.load %arg1[%c0, %c0_0] : memref<4x128xf32, #tpu.memory_space<vmem>>, vector<4x128xf32>
    %c0_1 = arith.constant 0 : index
    %c0_2 = arith.constant 0 : index
    %1 = vector.load %arg4[%c0_1, %c0_2] : memref<128x4xf32, #tpu.memory_space<vmem>>, vector<128x4xf32>
    %c0_3 = arith.constant 0 : index
    %c0_4 = arith.constant 0 : index
    %2 = vector.load %arg5[%c0_3, %c0_4] : memref<4x128xf32, #tpu.memory_space<vmem>>, vector<4x128xf32>
    %cst = arith.constant dense<0.000000e+00> : vector<4x4xf32>
    %3 = tpu.matmul %0, %1, %cst {dimension_numbers = #tpu.dot_dimension_numbers<[1], [0], [0], [1], [0, 0, 1, 1], [], []>, precision = #tpu.contract_precision<fp32>} : vector<4x128xf32>, vector<128x4xf32>, vector<4x4xf32> -> vector<4x4xf32>
    %cst_5 = arith.constant 3.200000e+01 : f32
    %4 = vector.broadcast %cst_5 : f32 to vector<4x4xf32>
    %5 = arith.divf %3, %4 : vector<4x4xf32>
    %cst_6 = arith.constant dense<0.000000e+00> : vector<4x128xf32>
    %6 = tpu.matmul %5, %2, %cst_6 {dimension_numbers = #tpu.dot_dimension_numbers<[1], [0], [0], [1], [0, 0, 1, 1], [], []>, precision = #tpu.contract_precision<fp32>} : vector<4x4xf32>, vector<4x128xf32>, vector<4x128xf32> -> vector<4x128xf32>
    %7 = arith.subf %0, %6 : vector<4x128xf32>
    %8 = arith.mulf %7, %7 : vector<4x128xf32>
    %cst_7 = arith.constant dense<0.000000e+00> : vector<4x4xf32>
    %9 = tpu.matmul %8, %1, %cst_7 {dimension_numbers = #tpu.dot_dimension_numbers<[1], [0], [0], [1], [0, 0, 1, 1], [], []>, precision = #tpu.contract_precision<fp32>} : vector<4x128xf32>, vector<128x4xf32>, vector<4x4xf32> -> vector<4x4xf32>
    %cst_8 = arith.constant 3.100000e+01 : f32
    %10 = vector.broadcast %cst_8 : f32 to vector<4x4xf32>
    %11 = arith.divf %9, %10 : vector<4x4xf32>
    %12 = math.sqrt %11 : vector<4x4xf32>
    %cst_9 = arith.constant 9.99999997E-7 : f32
    %13 = vector.broadcast %cst_9 : f32 to vector<4x4xf32>
    %14 = arith.addf %12, %13 : vector<4x4xf32>
    %15 = tpu.reciprocal %14 {approx = true} : vector<4x4xf32> -> vector<4x4xf32>
    %16 = arith.mulf %14, %15 : vector<4x4xf32>
    %cst_10 = arith.constant 2.000000e+00 : f32
    %17 = vector.broadcast %cst_10 : f32 to vector<4x4xf32>
    %18 = arith.subf %17, %16 : vector<4x4xf32>
    %19 = arith.mulf %15, %18 : vector<4x4xf32>
    %cst_11 = arith.constant dense<0.000000e+00> : vector<4x128xf32>
    %20 = tpu.matmul %19, %2, %cst_11 {dimension_numbers = #tpu.dot_dimension_numbers<[1], [0], [0], [1], [0, 0, 1, 1], [], []>, precision = #tpu.contract_precision<fp32>} : vector<4x4xf32>, vector<4x128xf32>, vector<4x128xf32> -> vector<4x128xf32>
    %c0_12 = arith.constant 0 : index
    %c0_13 = arith.constant 0 : index
    %21 = vector.load %arg2[%c0_12, %c0_13] : memref<1x128xf32, #tpu.memory_space<vmem>>, vector<1x128xf32>
    %22 = arith.mulf %7, %20 : vector<4x128xf32>
    %23 = vector.broadcast %21 : vector<1x128xf32> to vector<4x128xf32>
    %24 = arith.mulf %23, %22 : vector<4x128xf32>
    %c0_14 = arith.constant 0 : index
    %c0_15 = arith.constant 0 : index
    %25 = vector.load %arg3[%c0_14, %c0_15] : memref<1x128xf32, #tpu.memory_space<vmem>>, vector<1x128xf32>
    %26 = vector.broadcast %25 : vector<1x128xf32> to vector<4x128xf32>
    %27 = arith.addf %24, %26 : vector<4x128xf32>
    %c0_16 = arith.constant 0 : index
    %c0_17 = arith.constant 0 : index
    %28 = vector.load %arg6[%c0_16, %c0_17] : memref<4x128xf32, #tpu.memory_space<vmem>>, vector<4x128xf32>
    tpu.vector_store %arg6[%c0_16, %c0_17], %27 {strides = array<i32>} : memref<4x128xf32, #tpu.memory_space<vmem>>, vector<4x128xf32>,
    return
  }
  func.func @transform_0(%arg0: i32) -> (i32, i32) {
    %c0_i32 = arith.constant 0 : i32
    %c0_i32_0 = arith.constant 0 : i32
    return %arg0, %c0_i32 : i32, i32
  }
  func.func @transform_1(%arg0: i32) -> (i32, i32) {
    %c0_i32 = arith.constant 0 : i32
    %c0_i32_0 = arith.constant 0 : i32
    %c0_i32_1 = arith.constant 0 : i32
    return %c0_i32, %c0_i32_0 : i32, i32
  }
  func.func @transform_2(%arg0: i32) -> (i32, i32) {
    %c0_i32 = arith.constant 0 : i32
    %c0_i32_0 = arith.constant 0 : i32
    %c0_i32_1 = arith.constant 0 : i32
    return %c0_i32, %c0_i32_0 : i32, i32
  }
  func.func @transform_3(%arg0: i32) -> (i32, i32) {
    %c0_i32 = arith.constant 0 : i32
    %c0_i32_0 = arith.constant 0 : i32
    %c0_i32_1 = arith.constant 0 : i32
    return %c0_i32, %c0_i32_0 : i32, i32
  }
  func.func @transform_4(%arg0: i32) -> (i32, i32) {
    %c0_i32 = arith.constant 0 : i32
    %c0_i32_0 = arith.constant 0 : i32
    %c0_i32_1 = arith.constant 0 : i32
    return %c0_i32, %c0_i32_0 : i32, i32
  }
  func.func @transform_5(%arg0: i32) -> (i32, i32) {
    %c0_i32 = arith.constant 0 : i32
    %c0_i32_0 = arith.constant 0 : i32
    return %arg0, %c0_i32 : i32, i32
  }
}

</mosaic_0001>

<llo_original>
// kernel: tpu_custom_call.1
$region0: #{tpu_custom_call.1}
  #allocation0 [shape = 'u32[]', space=smem, size = 0x4, offset = 0x4, fixed_abs, tag = 'smem constant byte address 0x4 - core index']
  #allocation1 [shape = 'u32[72,128]{1,0:T(1,128)}', space=vmem, size = 0x9000, scoped, tag = 'internal scratch']
  %s0 = inlined_call_operand.vmem [shape: f32[4,128], index: 0, kind: input, shape index: {}]
  %s1 = inlined_call_operand.vmem [shape: f32[1,128], index: 1, kind: input, shape index: {}]
  %s2 = inlined_call_operand.vmem [shape: f32[1,128], index: 2, kind: input, shape index: {}]
  %s3 = inlined_call_operand.vmem [shape: f32[128,4], index: 3, kind: input, shape index: {}]
  %s4 = inlined_call_operand.vmem [shape: f32[4,128], index: 4, kind: input, shape index: {}]
  %s5 = inlined_call_operand.hbm [shape: f32[4,128], index: 5, kind: output, shape index: {}]
  %s6 = sld [smem:[#allocation0]]
  $region30: #{tpu_custom_call.1} parent=0
    _
  %s8 = ssub.s32 1, %s6
  %s9 = scalar_select 0, %s8, %s6
  $region1: #{tpu_custom_call.1} parent=0
    #allocation2 [shape = 'u8[2048]{0}', space=vmem, size = 0x800, scoped, tag = 'output window, operand 0, single buffered']
    #allocation3 [shape = 's32[1]{0}', space=sflag, size = 0x4, scoped, tag = 'scoped memory for tpu_custom_call.1']
    %10 = vsyncpa [#allocation3], 0
    // Predicated region
    $region2: #{tpu_custom_call.1} parent=1 // pred_check
      _
    $region3: #{tpu_custom_call.1} parent=1 // pred_check_branch
      %12 = sbr.rel (0) target = $region5
    $region4: #{tpu_custom_call.1} parent=1 // pred_region
      _
    $region5: #{tpu_custom_call.1} parent=1 // pred_fallthru
      _
    // Predicated region
    $region6: #{tpu_custom_call.1} parent=1 // pred_check
      _
    $region7: #{tpu_custom_call.1} parent=1 // pred_check_branch
      %14 = sbr.rel (0) target = $region9
    $region8: #{tpu_custom_call.1} parent=1 // pred_region
      _
    $region9: #{tpu_custom_call.1} parent=1 // pred_fallthru
      _
    // Predicated region
    $region10: #{tpu_custom_call.1} parent=1 // pred_check
      _
    $region11: #{tpu_custom_call.1} parent=1 // pred_check_branch
      %16 = sbr.rel (0) target = $region13
    $region12: #{tpu_custom_call.1} parent=1 // pred_region
      _
    $region13: #{tpu_custom_call.1} parent=1 // pred_fallthru
      _
    // Predicated region
    $region14: #{tpu_custom_call.1} parent=1 // pred_check
      _
    $region15: #{tpu_custom_call.1} parent=1 // pred_check_branch
      %18 = sbr.rel (0) target = $region17
    $region16: #{tpu_custom_call.1} parent=1 // pred_region
      _
    $region17: #{tpu_custom_call.1} parent=1 // pred_fallthru
      _
    // Predicated region
    $region18: #{tpu_custom_call.1} parent=1 // pred_check
      _
    $region19: #{tpu_custom_call.1} parent=1 // pred_check_branch
      %20 = sbr.rel (0) target = $region21
    $region20: #{tpu_custom_call.1} parent=1 // pred_region
      _
    $region21: #{tpu_custom_call.1} parent=1 // pred_fallthru
      _
    %v21 = vld [vmem:[%s0] sm:$0xf]
    %v22 = vld [vmem:[%s3] sm:$0xff]
    %v23 = vld [vmem:[%s3 + $0x8] sm:$0xff]
    %v24 = vld [vmem:[%s3 + $0x10] sm:$0xff]
    %v25 = vld [vmem:[%s3 + $0x18] sm:$0xff]
    %v26 = vld [vmem:[%s3 + $0x20] sm:$0xff]
    %v27 = vld [vmem:[%s3 + $0x28] sm:$0xff]
    %v28 = vld [vmem:[%s3 + $0x30] sm:$0xff]
    %v29 = vld [vmem:[%s3 + $0x38] sm:$0xff]
    %v30 = vld [vmem:[%s3 + $0x40] sm:$0xff]
    %v31 = vld [vmem:[%s3 + $0x48] sm:$0xff]
    %v32 = vld [vmem:[%s3 + $0x50] sm:$0xff]
    %v33 = vld [vmem:[%s3 + $0x58] sm:$0xff]
    %v34 = vld [vmem:[%s3 + $0x60] sm:$0xff]
    %v35 = vld [vmem:[%s3 + $0x68] sm:$0xff]
    %v36 = vld [vmem:[%s3 + $0x70] sm:$0xff]
    %v37 = vld [vmem:[%s3 + $0x78] sm:$0xff]
    %v38 = vld [vmem:[%s4] sm:$0xf]
    %v39 = vand.u32 %v37, 4294901760
    %40 = vmatpush.msra.mxu0 %v39
    %v41 = vand.u32 %v36, 4294901760
    %42 = vmatpush.msra.mxu0 %v41
    %v43 = vand.u32 %v35, 4294901760
    %44 = vmatpush.msra.mxu0 %v43
    %v45 = vand.u32 %v34, 4294901760
    %46 = vmatpush.msra.mxu0 %v45
    %v47 = vand.u32 %v33, 4294901760
    %48 = vmatpush.msra.mxu0 %v47
    %v49 = vand.u32 %v32, 4294901760
    %50 = vmatpush.msra.mxu0 %v49
    %v51 = vand.u32 %v31, 4294901760
    %52 = vmatpush.msra.mxu0 %v51
    %v53 = vand.u32 %v30, 4294901760
    %54 = vmatpush.msra.mxu0 %v53
    %v55 = vand.u32 %v29, 4294901760
    %56 = vmatpush.msra.mxu0 %v55
    %v57 = vand.u32 %v28, 4294901760
    %58 = vmatpush.msra.mxu0 %v57
    %v59 = vand.u32 %v27, 4294901760
    %60 = vmatpush.msra.mxu0 %v59
    %v61 = vand.u32 %v26, 4294901760
    %62 = vmatpush.msra.mxu0 %v61
    %v63 = vand.u32 %v25, 4294901760
    %64 = vmatpush.msra.mxu0 %v63
    %v65 = vand.u32 %v24, 4294901760
    %66 = vmatpush.msra.mxu0 %v65
    %v67 = vand.u32 %v23, 4294901760
    %68 = vmatpush.msra.mxu0 %v67
    %v69 = vand.u32 %v22, 4294901760
    %70 = vmatpush.msra.mxu0 %v69
    %v71 = vand.u32 %v21, 4294901760
    %v72 = vsub.f32 %v21, %v71
    %v73 = vand.u32 %v72, 4294901760
    %v74 = vsub.f32 %v72, %v73
    %v75 = vand.u32 %v74, 4294901760
    %76 = vmatmul.f32.gmra.mxu0 %v75
    %v77 = vpop.f32.mrf.mxu0
    %v78 = vadd.f32 0.0, %v77
    %79 = vdwg.mxu0
    %v80 = vand.u32 %v37, 4294901760
    %v81 = vsub.f32 %v37, %v80
    %v82 = vand.u32 %v81, 4294901760
    %v83 = vsub.f32 %v81, %v82
    %v84 = vand.u32 %v83, 4294901760
    %85 = vmatpush.msra.mxu0 %v84
    %v86 = vand.u32 %v36, 4294901760
    %v87 = vsub.f32 %v36, %v86
    %v88 = vand.u32 %v87, 4294901760
    %v89 = vsub.f32 %v87, %v88
    %v90 = vand.u32 %v89, 4294901760
    %91 = vmatpush.msra.mxu0 %v90
    %v92 = vand.u32 %v35, 4294901760
    %v93 = vsub.f32 %v35, %v92
    %v94 = vand.u32 %v93, 4294901760
    %v95 = vsub.f32 %v93, %v94
    %v96 = vand.u32 %v95, 4294901760
    %97 = vmatpush.msra.mxu0 %v96
    %v98 = vand.u32 %v34, 4294901760
    %v99 = vsub.f32 %v34, %v98
    %v100 = vand.u32 %v99, 4294901760
    %v101 = vsub.f32 %v99, %v100
    %v102 = vand.u32 %v101, 4294901760
    %103 = vmatpush.msra.mxu0 %v102
    %v104 = vand.u32 %v33, 4294901760
    %v105 = vsub.f32 %v33, %v104
    %v106 = vand.u32 %v105, 4294901760
    %v107 = vsub.f32 %v105, %v106
    %v108 = vand.u32 %v107, 4294901760
    %109 = vmatpush.msra.mxu0 %v108
    %v110 = vand.u32 %v32, 4294901760
    %v111 = vsub.f32 %v32, %v110
    %v112 = vand.u32 %v111, 4294901760
    %v113 = vsub.f32 %v111, %v112
    %v114 = vand.u32 %v113, 4294901760
    %115 = vmatpush.msra.mxu0 %v114
    %v116 = vand.u32 %v31, 4294901760
    %v117 = vsub.f32 %v31, %v116
    %v118 = vand.u32 %v117, 4294901760
    %v119 = vsub.f32 %v117, %v118
    %v120 = vand.u32 %v119, 4294901760
    %121 = vmatpush.msra.mxu0 %v120
    %v122 = vand.u32 %v30, 4294901760
    %v123 = vsub.f32 %v30, %v122
    %v124 = vand.u32 %v123, 4294901760
    %v125 = vsub.f32 %v123, %v124
    %v126 = vand.u32 %v125, 4294901760
    %127 = vmatpush.msra.mxu0 %v126
    %v128 = vand.u32 %v29, 4294901760
    %v129 = vsub.f32 %v29, %v128
    %v130 = vand.u32 %v129, 4294901760
    %v131 = vsub.f32 %v129, %v130
    %v132 = vand.u32 %v131, 4294901760
    %133 = vmatpush.msra.mxu0 %v132
    %v134 = vand.u32 %v28, 4294901760
    %v135 = vsub.f32 %v28, %v134
    %v136 = vand.u32 %v135, 4294901760
    %v137 = vsub.f32 %v135, %v136
    %v138 = vand.u32 %v137, 4294901760
    %139 = vmatpush.msra.mxu0 %v138
    %v140 = vand.u32 %v27, 4294901760
    %v141 = vsub.f32 %v27, %v140
    %v142 = vand.u32 %v141, 4294901760
    %v143 = vsub.f32 %v141, %v142
    %v144 = vand.u32 %v143, 4294901760
    %145 = vmatpush.msra.mxu0 %v144
    %v146 = vand.u32 %v26, 4294901760
    %v147 = vsub.f32 %v26, %v146
    %v148 = vand.u32 %v147, 4294901760
    %v149 = vsub.f32 %v147, %v148
    %v150 = vand.u32 %v149, 4294901760
    %151 = vmatpush.msra.mxu0 %v150
    %v152 = vand.u32 %v25, 4294901760
    %v153 = vsub.f32 %v25, %v152
    %v154 = vand.u32 %v153, 4294901760
    %v155 = vsub.f32 %v153, %v154
    %v156 = vand.u32 %v155, 4294901760
    %157 = vmatpush.msra.mxu0 %v156
    %v158 = vand.u32 %v24, 4294901760
    %v159 = vsub.f32 %v24, %v158
    %v160 = vand.u32 %v159, 4294901760
    %v161 = vsub.f32 %v159, %v160
    %v162 = vand.u32 %v161, 4294901760
    %163 = vmatpush.msra.mxu0 %v162
    %v164 = vand.u32 %v23, 4294901760
    %v165 = vsub.f32 %v23, %v164
    %v166 = vand.u32 %v165, 4294901760
    %v167 = vsub.f32 %v165, %v166
    %v168 = vand.u32 %v167, 4294901760
    %169 = vmatpush.msra.mxu0 %v168
    %v170 = vand.u32 %v22, 4294901760
    %v171 = vsub.f32 %v22, %v170
    %v172 = vand.u32 %v171, 4294901760
    %v173 = vsub.f32 %v171, %v172
    %v174 = vand.u32 %v173, 4294901760
    %175 = vmatpush.msra.mxu0 %v174
    %v176 = vand.u32 %v21, 4294901760
    %177 = vmatmul.f32.gmra.mxu0 %v176
    %v178 = vpop.f32.mrf.mxu0
    %v179 = vadd.f32 %v78, %v178
    %180 = vdwg.mxu0
    %v181 = vand.u32 %v37, 4294901760
    %v182 = vsub.f32 %v37, %v181
    %183 = vmatpush.msra.mxu0 %v182
    %v184 = vand.u32 %v36, 4294901760
    %v185 = vsub.f32 %v36, %v184
    %186 = vmatpush.msra.mxu0 %v185
    %v187 = vand.u32 %v35, 4294901760
    %v188 = vsub.f32 %v35, %v187
    %189 = vmatpush.msra.mxu0 %v188
    %v190 = vand.u32 %v34, 4294901760
    %v191 = vsub.f32 %v34, %v190
    %192 = vmatpush.msra.mxu0 %v191
    %v193 = vand.u32 %v33, 4294901760
    %v194 = vsub.f32 %v33, %v193
    %195 = vmatpush.msra.mxu0 %v194
    %v196 = vand.u32 %v32, 4294901760
    %v197 = vsub.f32 %v32, %v196
    %198 = vmatpush.msra.mxu0 %v197
    %v199 = vand.u32 %v31, 4294901760
    %v200 = vsub.f32 %v31, %v199
    %201 = vmatpush.msra.mxu0 %v200
    %v202 = vand.u32 %v30, 4294901760
    %v203 = vsub.f32 %v30, %v202
    %204 = vmatpush.msra.mxu0 %v203
    %v205 = vand.u32 %v29, 4294901760
    %v206 = vsub.f32 %v29, %v205
    %207 = vmatpush.msra.mxu0 %v206
    %v208 = vand.u32 %v28, 4294901760
    %v209 = vsub.f32 %v28, %v208
    %210 = vmatpush.msra.mxu0 %v209
    %v211 = vand.u32 %v27, 4294901760
    %v212 = vsub.f32 %v27, %v211
    %213 = vmatpush.msra.mxu0 %v212
    %v214 = vand.u32 %v26, 4294901760
    %v215 = vsub.f32 %v26, %v214
    %216 = vmatpush.msra.mxu0 %v215
    %v217 = vand.u32 %v25, 4294901760
    %v218 = vsub.f32 %v25, %v217
    %219 = vmatpush.msra.mxu0 %v218
    %v220 = vand.u32 %v24, 4294901760
    %v221 = vsub.f32 %v24, %v220
    %222 = vmatpush.msra.mxu0 %v221
    %v223 = vand.u32 %v23, 4294901760
    %v224 = vsub.f32 %v23, %v223
    %225 = vmatpush.msra.mxu0 %v224
    %v226 = vand.u32 %v22, 4294901760
    %v227 = vsub.f32 %v22, %v226
    %228 = vmatpush.msra.mxu0 %v227
    %v229 = vand.u32 %v21, 4294901760
    %v230 = vsub.f32 %v21, %v229
    %231 = vmatmul.f32.gmra.mxu0 %v230
    %v232 = vpop.f32.mrf.mxu0
    %v233 = vadd.f32 %v179, %v232
    %234 = vdwg.mxu0
    %v235 = vand.u32 %v37, 4294901760
    %236 = vmatpush.msra.mxu0 %v235
    %v237 = vand.u32 %v36, 4294901760
    %238 = vmatpush.msra.mxu0 %v237
    %v239 = vand.u32 %v35, 4294901760
    %240 = vmatpush.msra.mxu0 %v239
    %v241 = vand.u32 %v34, 4294901760
    %242 = vmatpush.msra.mxu0 %v241
    %v243 = vand.u32 %v33, 4294901760
    %244 = vmatpush.msra.mxu0 %v243
    %v245 = vand.u32 %v32, 4294901760
    %246 = vmatpush.msra.mxu0 %v245
    %v247 = vand.u32 %v31, 4294901760
    %248 = vmatpush.msra.mxu0 %v247
    %v249 = vand.u32 %v30, 4294901760
    %250 = vmatpush.msra.mxu0 %v249
    %v251 = vand.u32 %v29, 4294901760
    %252 = vmatpush.msra.mxu0 %v251
    %v253 = vand.u32 %v28, 4294901760
    %254 = vmatpush.msra.mxu0 %v253
    %v255 = vand.u32 %v27, 4294901760
    %256 = vmatpush.msra.mxu0 %v255
    %v257 = vand.u32 %v26, 4294901760
    %258 = vmatpush.msra.mxu0 %v257
    %v259 = vand.u32 %v25, 4294901760
    %260 = vmatpush.msra.mxu0 %v259
    %v261 = vand.u32 %v24, 4294901760
    %262 = vmatpush.msra.mxu0 %v261
    %v263 = vand.u32 %v23, 4294901760
    %264 = vmatpush.msra.mxu0 %v263
    %v265 = vand.u32 %v22, 4294901760
    %266 = vmatpush.msra.mxu0 %v265
    %v267 = vand.u32 %v21, 4294901760
    %v268 = vsub.f32 %v21, %v267
    %v269 = vand.u32 %v268, 4294901760
    %270 = vmatmul.f32.gmra.mxu0 %v269
    %v271 = vpop.f32.mrf.mxu0
    %v272 = vadd.f32 %v233, %v271
    %273 = vdwg.mxu0
    %v274 = vand.u32 %v37, 4294901760
    %v275 = vsub.f32 %v37, %v274
    %v276 = vand.u32 %v275, 4294901760
    %277 = vmatpush.msra.mxu0 %v276
    %v278 = vand.u32 %v36, 4294901760
    %v279 = vsub.f32 %v36, %v278
    %v280 = vand.u32 %v279, 4294901760
    %281 = vmatpush.msra.mxu0 %v280
    %v282 = vand.u32 %v35, 4294901760
    %v283 = vsub.f32 %v35, %v282
    %v284 = vand.u32 %v283, 4294901760
    %285 = vmatpush.msra.mxu0 %v284
    %v286 = vand.u32 %v34, 4294901760
    %v287 = vsub.f32 %v34, %v286
    %v288 = vand.u32 %v287, 4294901760
    %289 = vmatpush.msra.mxu0 %v288
    %v290 = vand.u32 %v33, 4294901760
    %v291 = vsub.f32 %v33, %v290
    %v292 = vand.u32 %v291, 4294901760
    %293 = vmatpush.msra.mxu0 %v292
    %v294 = vand.u32 %v32, 4294901760
    %v295 = vsub.f32 %v32, %v294
    %v296 = vand.u32 %v295, 4294901760
    %297 = vmatpush.msra.mxu0 %v296
    %v298 = vand.u32 %v31, 4294901760
    %v299 = vsub.f32 %v31, %v298
    %v300 = vand.u32 %v299, 4294901760
    %301 = vmatpush.msra.mxu0 %v300
    %v302 = vand.u32 %v30, 4294901760
    %v303 = vsub.f32 %v30, %v302
    %v304 = vand.u32 %v303, 4294901760
    %305 = vmatpush.msra.mxu0 %v304
    %v306 = vand.u32 %v29, 4294901760
    %v307 = vsub.f32 %v29, %v306
    %v308 = vand.u32 %v307, 4294901760
    %309 = vmatpush.msra.mxu0 %v308
    %v310 = vand.u32 %v28, 4294901760
    %v311 = vsub.f32 %v28, %v310
    %v312 = vand.u32 %v311, 4294901760
    %313 = vmatpush.msra.mxu0 %v312
    %v314 = vand.u32 %v27, 4294901760
    %v315 = vsub.f32 %v27, %v314
    %v316 = vand.u32 %v315, 4294901760
    %317 = vmatpush.msra.mxu0 %v316
    %v318 = vand.u32 %v26, 4294901760
    %v319 = vsub.f32 %v26, %v318
    %v320 = vand.u32 %v319, 4294901760
    %321 = vmatpush.msra.mxu0 %v320
    %v322 = vand.u32 %v25, 4294901760
    %v323 = vsub.f32 %v25, %v322
    %v324 = vand.u32 %v323, 4294901760
    %325 = vmatpush.msra.mxu0 %v324
    %v326 = vand.u32 %v24, 4294901760
    %v327 = vsub.f32 %v24, %v326
    %v328 = vand.u32 %v327, 4294901760
    %329 = vmatpush.msra.mxu0 %v328
    %v330 = vand.u32 %v23, 4294901760
    %v331 = vsub.f32 %v23, %v330
    %v332 = vand.u32 %v331, 4294901760
    %333 = vmatpush.msra.mxu0 %v332
    %v334 = vand.u32 %v22, 4294901760
    %v335 = vsub.f32 %v22, %v334
    %v336 = vand.u32 %v335, 4294901760
    %337 = vmatpush.msra.mxu0 %v336
    %v338 = vand.u32 %v21, 4294901760
    %339 = vmatmul.f32.gmra.mxu0 %v338
    %v340 = vpop.f32.mrf.mxu0
    %v341 = vadd.f32 %v272, %v340
    %342 = vdwg.mxu0
    %v343 = vand.u32 %v37, 4294901760
    %344 = vmatpush.msra.mxu0 %v343
    %v345 = vand.u32 %v36, 4294901760
    %346 = vmatpush.msra.mxu0 %v345
    %v347 = vand.u32 %v35, 4294901760
    %348 = vmatpush.msra.mxu0 %v347
    %v349 = vand.u32 %v34, 4294901760
    %350 = vmatpush.msra.mxu0 %v349
    %v351 = vand.u32 %v33, 4294901760
    %352 = vmatpush.msra.mxu0 %v351
    %v353 = vand.u32 %v32, 4294901760
    %354 = vmatpush.msra.mxu0 %v353
    %v355 = vand.u32 %v31, 4294901760
    %356 = vmatpush.msra.mxu0 %v355
    %v357 = vand.u32 %v30, 4294901760
    %358 = vmatpush.msra.mxu0 %v357
    %v359 = vand.u32 %v29, 4294901760
    %360 = vmatpush.msra.mxu0 %v359
    %v361 = vand.u32 %v28, 4294901760
    %362 = vmatpush.msra.mxu0 %v361
    %v363 = vand.u32 %v27, 4294901760
    %364 = vmatpush.msra.mxu0 %v363
    %v365 = vand.u32 %v26, 4294901760
    %366 = vmatpush.msra.mxu0 %v365
    %v367 = vand.u32 %v25, 4294901760
    %368 = vmatpush.msra.mxu0 %v367
    %v369 = vand.u32 %v24, 4294901760
    %370 = vmatpush.msra.mxu0 %v369
    %v371 = vand.u32 %v23, 4294901760
    %372 = vmatpush.msra.mxu0 %v371
    %v373 = vand.u32 %v22, 4294901760
    %374 = vmatpush.msra.mxu0 %v373
    %v375 = vand.u32 %v21, 4294901760
    %376 = vmatmul.f32.gmra.mxu0 %v375
    %v377 = vpop.f32.mrf.mxu0
    %v378 = vadd.f32 %v341, %v377
    %379 = vdwg.mxu0
    %v380 = vrcp.pop 32.0
    %v381 = vmul.f32 32.0, %v380
    %v382 = vsub.f32 1.0, %v381
    %v383 = vmul.f32 %v380, %v382
    %v384 = vadd.f32 %v380, %v383
    %vm385 = vweird.f32 %v380
    %v386 = vsel %vm385, %v380, %v384
    %v387 = vmul.f32 %v378, %v386
    %vm388 = vcmask 31744
    %v390 = vsel %vm388, %v387, 0
    %vm392 = vcmask 1043456
    %v394 = vsel %vm392, %v38, 0
    %396 = vmatpush.msra.mxu0 0.0
    %397 = vmatpush.msra.mxu0 0.0
    %398 = vmatpush.msra.mxu0 0.0
    %399 = vmatpush.msra.mxu0 0.0
    %400 = vmatpush.msra.mxu0 0.0
    %401 = vmatpush.msra.mxu0 0.0
    %402 = vmatpush.msra.mxu0 0.0
    %403 = vmatpush.msra.mxu0 0.0
    %404 = vmatpush.msra.mxu0 0.0
    %405 = vmatpush.msra.mxu0 0.0
    %406 = vmatpush.msra.mxu0 0.0
    %407 = vmatpush.msra.mxu0 0.0
    %408 = vmatpush.msra.mxu0 0.0
    %409 = vmatpush.msra.mxu0 0.0
    %410 = vmatpush.msra.mxu0 0.0
    %v411 = vand.u32 %v394, 4294901760
    %412 = vmatpush.msra.mxu0 %v411
    %v413 = vand.u32 %v390, 4294901760
    %v414 = vsub.f32 %v390, %v413
    %v415 = vand.u32 %v414, 4294901760
    %v416 = vsub.f32 %v414, %v415
    %v417 = vand.u32 %v416, 4294901760
    %418 = vmatmul.f32.gmra.mxu0 %v417
    %v419 = vpop.f32.mrf.mxu0
    %v420 = vadd.f32 0.0, %v419
    %421 = vdwg.mxu0
    %422 = vmatpush.msra.mxu0 0.0
    %423 = vmatpush.msra.mxu0 0.0
    %424 = vmatpush.msra.mxu0 0.0
    %425 = vmatpush.msra.mxu0 0.0
    %426 = vmatpush.msra.mxu0 0.0
    %427 = vmatpush.msra.mxu0 0.0
    %428 = vmatpush.msra.mxu0 0.0
    %429 = vmatpush.msra.mxu0 0.0
    %430 = vmatpush.msra.mxu0 0.0
    %431 = vmatpush.msra.mxu0 0.0
    %432 = vmatpush.msra.mxu0 0.0
    %433 = vmatpush.msra.mxu0 0.0
    %434 = vmatpush.msra.mxu0 0.0
    %435 = vmatpush.msra.mxu0 0.0
    %436 = vmatpush.msra.mxu0 0.0
    %v437 = vand.u32 %v394, 4294901760
    %v438 = vsub.f32 %v394, %v437
    %v439 = vand.u32 %v438, 4294901760
    %v440 = vsub.f32 %v438, %v439
    %v441 = vand.u32 %v440, 4294901760
    %442 = vmatpush.msra.mxu0 %v441
    %v443 = vand.u32 %v390, 4294901760
    %444 = vmatmul.f32.gmra.mxu0 %v443
    %v445 = vpop.f32.mrf.mxu0
    %v446 = vadd.f32 %v420, %v445
    %447 = vdwg.mxu0
    %448 = vmatpush.msra.mxu0 0.0
    %449 = vmatpush.msra.mxu0 0.0
    %450 = vmatpush.msra.mxu0 0.0
    %451 = vmatpush.msra.mxu0 0.0
    %452 = vmatpush.msra.mxu0 0.0
    %453 = vmatpush.msra.mxu0 0.0
    %454 = vmatpush.msra.mxu0 0.0
    %455 = vmatpush.msra.mxu0 0.0
    %456 = vmatpush.msra.mxu0 0.0
    %457 = vmatpush.msra.mxu0 0.0
    %458 = vmatpush.msra.mxu0 0.0
    %459 = vmatpush.msra.mxu0 0.0
    %460 = vmatpush.msra.mxu0 0.0
    %461 = vmatpush.msra.mxu0 0.0
    %462 = vmatpush.msra.mxu0 0.0
    %v463 = vand.u32 %v394, 4294901760
    %v464 = vsub.f32 %v394, %v463
    %465 = vmatpush.msra.mxu0 %v464
    %v466 = vand.u32 %v390, 4294901760
    %v467 = vsub.f32 %v390, %v466
    %468 = vmatmul.f32.gmra.mxu0 %v467
    %v469 = vpop.f32.mrf.mxu0
    %v470 = vadd.f32 %v446, %v469
    %471 = vdwg.mxu0
    %472 = vmatpush.msra.mxu0 0.0
    %473 = vmatpush.msra.mxu0 0.0
    %474 = vmatpush.msra.mxu0 0.0
    %475 = vmatpush.msra.mxu0 0.0
    %476 = vmatpush.msra.mxu0 0.0
    %477 = vmatpush.msra.mxu0 0.0
    %478 = vmatpush.msra.mxu0 0.0
    %479 = vmatpush.msra.mxu0 0.0
    %480 = vmatpush.msra.mxu0 0.0
    %481 = vmatpush.msra.mxu0 0.0
    %482 = vmatpush.msra.mxu0 0.0
    %483 = vmatpush.msra.mxu0 0.0
    %484 = vmatpush.msra.mxu0 0.0
    %485 = vmatpush.msra.mxu0 0.0
    %486 = vmatpush.msra.mxu0 0.0
    %v487 = vand.u32 %v394, 4294901760
    %488 = vmatpush.msra.mxu0 %v487
    %v489 = vand.u32 %v390, 4294901760
    %v490 = vsub.f32 %v390, %v489
    %v491 = vand.u32 %v490, 4294901760
    %492 = vmatmul.f32.gmra.mxu0 %v491
    %v493 = vpop.f32.mrf.mxu0
    %v494 = vadd.f32 %v470, %v493
    %495 = vdwg.mxu0
    %496 = vmatpush.msra.mxu0 0.0
    %497 = vmatpush.msra.mxu0 0.0
    %498 = vmatpush.msra.mxu0 0.0
    %499 = vmatpush.msra.mxu0 0.0
    %500 = vmatpush.msra.mxu0 0.0
    %501 = vmatpush.msra.mxu0 0.0
    %502 = vmatpush.msra.mxu0 0.0
    %503 = vmatpush.msra.mxu0 0.0
    %504 = vmatpush.msra.mxu0 0.0
    %505 = vmatpush.msra.mxu0 0.0
    %506 = vmatpush.msra.mxu0 0.0
    %507 = vmatpush.msra.mxu0 0.0
    %508 = vmatpush.msra.mxu0 0.0
    %509 = vmatpush.msra.mxu0 0.0
    %510 = vmatpush.msra.mxu0 0.0
    %v511 = vand.u32 %v394, 4294901760
    %v512 = vsub.f32 %v394, %v511
    %v513 = vand.u32 %v512, 4294901760
    %514 = vmatpush.msra.mxu0 %v513
    %v515 = vand.u32 %v390, 4294901760
    %516 = vmatmul.f32.gmra.mxu0 %v515
    %v517 = vpop.f32.mrf.mxu0
    %v518 = vadd.f32 %v494, %v517
    %519 = vdwg.mxu0
    %520 = vmatpush.msra.mxu0 0.0
    %521 = vmatpush.msra.mxu0 0.0
    %522 = vmatpush.msra.mxu0 0.0
    %523 = vmatpush.msra.mxu0 0.0
    %524 = vmatpush.msra.mxu0 0.0
    %525 = vmatpush.msra.mxu0 0.0
    %526 = vmatpush.msra.mxu0 0.0
    %527 = vmatpush.msra.mxu0 0.0
    %528 = vmatpush.msra.mxu0 0.0
    %529 = vmatpush.msra.mxu0 0.0
    %530 = vmatpush.msra.mxu0 0.0
    %531 = vmatpush.msra.mxu0 0.0
    %532 = vmatpush.msra.mxu0 0.0
    %533 = vmatpush.msra.mxu0 0.0
    %534 = vmatpush.msra.mxu0 0.0
    %v535 = vand.u32 %v394, 4294901760
    %536 = vmatpush.msra.mxu0 %v535
    %v537 = vand.u32 %v390, 4294901760
    %538 = vmatmul.f32.gmra.mxu0 %v537
    %v539 = vpop.f32.mrf.mxu0
    %v540 = vadd.f32 %v518, %v539
    %541 = vdwg.mxu0
    %v542 = vsub.f32 %v21, %v540
    %v543 = vmul.f32 %v542, %v542
    %v544 = vand.u32 %v37, 4294901760
    %545 = vmatpush.msra.mxu0 %v544
    %v546 = vand.u32 %v36, 4294901760
    %547 = vmatpush.msra.mxu0 %v546
    %v548 = vand.u32 %v35, 4294901760
    %549 = vmatpush.msra.mxu0 %v548
    %v550 = vand.u32 %v34, 4294901760
    %551 = vmatpush.msra.mxu0 %v550
    %v552 = vand.u32 %v33, 4294901760
    %553 = vmatpush.msra.mxu0 %v552
    %v554 = vand.u32 %v32, 4294901760
    %555 = vmatpush.msra.mxu0 %v554
    %v556 = vand.u32 %v31, 4294901760
    %557 = vmatpush.msra.mxu0 %v556
    %v558 = vand.u32 %v30, 4294901760
    %559 = vmatpush.msra.mxu0 %v558
    %v560 = vand.u32 %v29, 4294901760
    %561 = vmatpush.msra.mxu0 %v560
    %v562 = vand.u32 %v28, 4294901760
    %563 = vmatpush.msra.mxu0 %v562
    %v564 = vand.u32 %v27, 4294901760
    %565 = vmatpush.msra.mxu0 %v564
    %v566 = vand.u32 %v26, 4294901760
    %567 = vmatpush.msra.mxu0 %v566
    %v568 = vand.u32 %v25, 4294901760
    %569 = vmatpush.msra.mxu0 %v568
    %v570 = vand.u32 %v24, 4294901760
    %571 = vmatpush.msra.mxu0 %v570
    %v572 = vand.u32 %v23, 4294901760
    %573 = vmatpush.msra.mxu0 %v572
    %v574 = vand.u32 %v22, 4294901760
    %575 = vmatpush.msra.mxu0 %v574
    %v576 = vand.u32 %v543, 4294901760
    %v577 = vsub.f32 %v543, %v576
    %v578 = vand.u32 %v577, 4294901760
    %v579 = vsub.f32 %v577, %v578
    %v580 = vand.u32 %v579, 4294901760
    %581 = vmatmul.f32.gmra.mxu0 %v580
    %v582 = vpop.f32.mrf.mxu0
    %v583 = vadd.f32 0.0, %v582
    %584 = vdwg.mxu0
    %v585 = vand.u32 %v37, 4294901760
    %v586 = vsub.f32 %v37, %v585
    %v587 = vand.u32 %v586, 4294901760
    %v588 = vsub.f32 %v586, %v587
    %v589 = vand.u32 %v588, 4294901760
    %590 = vmatpush.msra.mxu0 %v589
    %v591 = vand.u32 %v36, 4294901760
    %v592 = vsub.f32 %v36, %v591
    %v593 = vand.u32 %v592, 4294901760
    %v594 = vsub.f32 %v592, %v593
    %v595 = vand.u32 %v594, 4294901760
    %596 = vmatpush.msra.mxu0 %v595
    %v597 = vand.u32 %v35, 4294901760
    %v598 = vsub.f32 %v35, %v597
    %v599 = vand.u32 %v598, 4294901760
    %v600 = vsub.f32 %v598, %v599
    %v601 = vand.u32 %v600, 4294901760
    %602 = vmatpush.msra.mxu0 %v601
    %v603 = vand.u32 %v34, 4294901760
    %v604 = vsub.f32 %v34, %v603
    %v605 = vand.u32 %v604, 4294901760
    %v606 = vsub.f32 %v604, %v605
    %v607 = vand.u32 %v606, 4294901760
    %608 = vmatpush.msra.mxu0 %v607
    %v609 = vand.u32 %v33, 4294901760
    %v610 = vsub.f32 %v33, %v609
    %v611 = vand.u32 %v610, 4294901760
    %v612 = vsub.f32 %v610, %v611
    %v613 = vand.u32 %v612, 4294901760
    %614 = vmatpush.msra.mxu0 %v613
    %v615 = vand.u32 %v32, 4294901760
    %v616 = vsub.f32 %v32, %v615
    %v617 = vand.u32 %v616, 4294901760
    %v618 = vsub.f32 %v616, %v617
    %v619 = vand.u32 %v618, 4294901760
    %620 = vmatpush.msra.mxu0 %v619
    %v621 = vand.u32 %v31, 4294901760
    %v622 = vsub.f32 %v31, %v621
    %v623 = vand.u32 %v622, 4294901760
    %v624 = vsub.f32 %v622, %v623
    %v625 = vand.u32 %v624, 4294901760
    %626 = vmatpush.msra.mxu0 %v625
    %v627 = vand.u32 %v30, 4294901760
    %v628 = vsub.f32 %v30, %v627
    %v629 = vand.u32 %v628, 4294901760
    %v630 = vsub.f32 %v628, %v629
    %v631 = vand.u32 %v630, 4294901760
    %632 = vmatpush.msra.mxu0 %v631
    %v633 = vand.u32 %v29, 4294901760
    %v634 = vsub.f32 %v29, %v633
    %v635 = vand.u32 %v634, 4294901760
    %v636 = vsub.f32 %v634, %v635
    %v637 = vand.u32 %v636, 4294901760
    %638 = vmatpush.msra.mxu0 %v637
    %v639 = vand.u32 %v28, 4294901760
    %v640 = vsub.f32 %v28, %v639
    %v641 = vand.u32 %v640, 4294901760
    %v642 = vsub.f32 %v640, %v641
    %v643 = vand.u32 %v642, 4294901760
    %644 = vmatpush.msra.mxu0 %v643
    %v645 = vand.u32 %v27, 4294901760
    %v646 = vsub.f32 %v27, %v645
    %v647 = vand.u32 %v646, 4294901760
    %v648 = vsub.f32 %v646, %v647
    %v649 = vand.u32 %v648, 4294901760
    %650 = vmatpush.msra.mxu0 %v649
    %v651 = vand.u32 %v26, 4294901760
    %v652 = vsub.f32 %v26, %v651
    %v653 = vand.u32 %v652, 4294901760
    %v654 = vsub.f32 %v652, %v653
    %v655 = vand.u32 %v654, 4294901760
    %656 = vmatpush.msra.mxu0 %v655
    %v657 = vand.u32 %v25, 4294901760
    %v658 = vsub.f32 %v25, %v657
    %v659 = vand.u32 %v658, 4294901760
    %v660 = vsub.f32 %v658, %v659
    %v661 = vand.u32 %v660, 4294901760
    %662 = vmatpush.msra.mxu0 %v661
    %v663 = vand.u32 %v24, 4294901760
    %v664 = vsub.f32 %v24, %v663
    %v665 = vand.u32 %v664, 4294901760
    %v666 = vsub.f32 %v664, %v665
    %v667 = vand.u32 %v666, 4294901760
    %668 = vmatpush.msra.mxu0 %v667
    %v669 = vand.u32 %v23, 4294901760
    %v670 = vsub.f32 %v23, %v669
    %v671 = vand.u32 %v670, 4294901760
    %v672 = vsub.f32 %v670, %v671
    %v673 = vand.u32 %v672, 4294901760
    %674 = vmatpush.msra.mxu0 %v673
    %v675 = vand.u32 %v22, 4294901760
    %v676 = vsub.f32 %v22, %v675
    %v677 = vand.u32 %v676, 4294901760
    %v678 = vsub.f32 %v676, %v677
    %v679 = vand.u32 %v678, 4294901760
    %680 = vmatpush.msra.mxu0 %v679
    %v681 = vand.u32 %v543, 4294901760
    %682 = vmatmul.f32.gmra.mxu0 %v681
    %v683 = vpop.f32.mrf.mxu0
    %v684 = vadd.f32 %v583, %v683
    %685 = vdwg.mxu0
    %v686 = vand.u32 %v37, 4294901760
    %v687 = vsub.f32 %v37, %v686
    %688 = vmatpush.msra.mxu0 %v687
    %v689 = vand.u32 %v36, 4294901760
    %v690 = vsub.f32 %v36, %v689
    %691 = vmatpush.msra.mxu0 %v690
    %v692 = vand.u32 %v35, 4294901760
    %v693 = vsub.f32 %v35, %v692
    %694 = vmatpush.msra.mxu0 %v693
    %v695 = vand.u32 %v34, 4294901760
    %v696 = vsub.f32 %v34, %v695
    %697 = vmatpush.msra.mxu0 %v696
    %v698 = vand.u32 %v33, 4294901760
    %v699 = vsub.f32 %v33, %v698
    %700 = vmatpush.msra.mxu0 %v699
    %v701 = vand.u32 %v32, 4294901760
    %v702 = vsub.f32 %v32, %v701
    %703 = vmatpush.msra.mxu0 %v702
    %v704 = vand.u32 %v31, 4294901760
    %v705 = vsub.f32 %v31, %v704
    %706 = vmatpush.msra.mxu0 %v705
    %v707 = vand.u32 %v30, 4294901760
    %v708 = vsub.f32 %v30, %v707
    %709 = vmatpush.msra.mxu0 %v708
    %v710 = vand.u32 %v29, 4294901760
    %v711 = vsub.f32 %v29, %v710
    %712 = vmatpush.msra.mxu0 %v711
    %v713 = vand.u32 %v28, 4294901760
    %v714 = vsub.f32 %v28, %v713
    %715 = vmatpush.msra.mxu0 %v714
    %v716 = vand.u32 %v27, 4294901760
    %v717 = vsub.f32 %v27, %v716
    %718 = vmatpush.msra.mxu0 %v717
    %v719 = vand.u32 %v26, 4294901760
    %v720 = vsub.f32 %v26, %v719
    %721 = vmatpush.msra.mxu0 %v720
    %v722 = vand.u32 %v25, 4294901760
    %v723 = vsub.f32 %v25, %v722
    %724 = vmatpush.msra.mxu0 %v723
    %v725 = vand.u32 %v24, 4294901760
    %v726 = vsub.f32 %v24, %v725
    %727 = vmatpush.msra.mxu0 %v726
    %v728 = vand.u32 %v23, 4294901760
    %v729 = vsub.f32 %v23, %v728
    %730 = vmatpush.msra.mxu0 %v729
    %v731 = vand.u32 %v22, 4294901760
    %v732 = vsub.f32 %v22, %v731
    %733 = vmatpush.msra.mxu0 %v732
    %v734 = vand.u32 %v543, 4294901760
    %v735 = vsub.f32 %v543, %v734
    %736 = vmatmul.f32.gmra.mxu0 %v735
    %v737 = vpop.f32.mrf.mxu0
    %v738 = vadd.f32 %v684, %v737
    %739 = vdwg.mxu0
    %v740 = vand.u32 %v37, 4294901760
    %741 = vmatpush.msra.mxu0 %v740
    %v742 = vand.u32 %v36, 4294901760
    %743 = vmatpush.msra.mxu0 %v742
    %v744 = vand.u32 %v35, 4294901760
    %745 = vmatpush.msra.mxu0 %v744
    %v746 = vand.u32 %v34, 4294901760
    %747 = vmatpush.msra.mxu0 %v746
    %v748 = vand.u32 %v33, 4294901760
    %749 = vmatpush.msra.mxu0 %v748
    %v750 = vand.u32 %v32, 4294901760
    %751 = vmatpush.msra.mxu0 %v750
    %v752 = vand.u32 %v31, 4294901760
    %753 = vmatpush.msra.mxu0 %v752
    %v754 = vand.u32 %v30, 4294901760
    %755 = vmatpush.msra.mxu0 %v754
    %v756 = vand.u32 %v29, 4294901760
    %757 = vmatpush.msra.mxu0 %v756
    %v758 = vand.u32 %v28, 4294901760
    %759 = vmatpush.msra.mxu0 %v758
    %v760 = vand.u32 %v27, 4294901760
    %761 = vmatpush.msra.mxu0 %v760
    %v762 = vand.u32 %v26, 4294901760
    %763 = vmatpush.msra.mxu0 %v762
    %v764 = vand.u32 %v25, 4294901760
    %765 = vmatpush.msra.mxu0 %v764
    %v766 = vand.u32 %v24, 4294901760
    %767 = vmatpush.msra.mxu0 %v766
    %v768 = vand.u32 %v23, 4294901760
    %769 = vmatpush.msra.mxu0 %v768
    %v770 = vand.u32 %v22, 4294901760
    %771 = vmatpush.msra.mxu0 %v770
    %v772 = vand.u32 %v543, 4294901760
    %v773 = vsub.f32 %v543, %v772
    %v774 = vand.u32 %v773, 4294901760
    %775 = vmatmul.f32.gmra.mxu0 %v774
    %v776 = vpop.f32.mrf.mxu0
    %v777 = vadd.f32 %v738, %v776
    %778 = vdwg.mxu0
    %v779 = vand.u32 %v37, 4294901760
    %v780 = vsub.f32 %v37, %v779
    %v781 = vand.u32 %v780, 4294901760
    %782 = vmatpush.msra.mxu0 %v781
    %v783 = vand.u32 %v36, 4294901760
    %v784 = vsub.f32 %v36, %v783
    %v785 = vand.u32 %v784, 4294901760
    %786 = vmatpush.msra.mxu0 %v785
    %v787 = vand.u32 %v35, 4294901760
    %v788 = vsub.f32 %v35, %v787
    %v789 = vand.u32 %v788, 4294901760
    %790 = vmatpush.msra.mxu0 %v789
    %v791 = vand.u32 %v34, 4294901760
    %v792 = vsub.f32 %v34, %v791
    %v793 = vand.u32 %v792, 4294901760
    %794 = vmatpush.msra.mxu0 %v793
    %v795 = vand.u32 %v33, 4294901760
    %v796 = vsub.f32 %v33, %v795
    %v797 = vand.u32 %v796, 4294901760
    %798 = vmatpush.msra.mxu0 %v797
    %v799 = vand.u32 %v32, 4294901760
    %v800 = vsub.f32 %v32, %v799
    %v801 = vand.u32 %v800, 4294901760
    %802 = vmatpush.msra.mxu0 %v801
    %v803 = vand.u32 %v31, 4294901760
    %v804 = vsub.f32 %v31, %v803
    %v805 = vand.u32 %v804, 4294901760
    %806 = vmatpush.msra.mxu0 %v805
    %v807 = vand.u32 %v30, 4294901760
    %v808 = vsub.f32 %v30, %v807
    %v809 = vand.u32 %v808, 4294901760
    %810 = vmatpush.msra.mxu0 %v809
    %v811 = vand.u32 %v29, 4294901760
    %v812 = vsub.f32 %v29, %v811
    %v813 = vand.u32 %v812, 4294901760
    %814 = vmatpush.msra.mxu0 %v813
    %v815 = vand.u32 %v28, 4294901760
    %v816 = vsub.f32 %v28, %v815
    %v817 = vand.u32 %v816, 4294901760
    %818 = vmatpush.msra.mxu0 %v817
    %v819 = vand.u32 %v27, 4294901760
    %v820 = vsub.f32 %v27, %v819
    %v821 = vand.u32 %v820, 4294901760
    %822 = vmatpush.msra.mxu0 %v821
    %v823 = vand.u32 %v26, 4294901760
    %v824 = vsub.f32 %v26, %v823
    %v825 = vand.u32 %v824, 4294901760
    %826 = vmatpush.msra.mxu0 %v825
    %v827 = vand.u32 %v25, 4294901760
    %v828 = vsub.f32 %v25, %v827
    %v829 = vand.u32 %v828, 4294901760
    %830 = vmatpush.msra.mxu0 %v829
    %v831 = vand.u32 %v24, 4294901760
    %v832 = vsub.f32 %v24, %v831
    %v833 = vand.u32 %v832, 4294901760
    %834 = vmatpush.msra.mxu0 %v833
    %v835 = vand.u32 %v23, 4294901760
    %v836 = vsub.f32 %v23, %v835
    %v837 = vand.u32 %v836, 4294901760
    %838 = vmatpush.msra.mxu0 %v837
    %v839 = vand.u32 %v22, 4294901760
    %v840 = vsub.f32 %v22, %v839
    %v841 = vand.u32 %v840, 4294901760
    %842 = vmatpush.msra.mxu0 %v841
    %v843 = vand.u32 %v543, 4294901760
    %844 = vmatmul.f32.gmra.mxu0 %v843
    %v845 = vpop.f32.mrf.mxu0
    %v846 = vadd.f32 %v777, %v845
    %847 = vdwg.mxu0
    %v848 = vand.u32 %v37, 4294901760
    %849 = vmatpush.msra.mxu0 %v848
    %v850 = vand.u32 %v36, 4294901760
    %851 = vmatpush.msra.mxu0 %v850
    %v852 = vand.u32 %v35, 4294901760
    %853 = vmatpush.msra.mxu0 %v852
    %v854 = vand.u32 %v34, 4294901760
    %855 = vmatpush.msra.mxu0 %v854
    %v856 = vand.u32 %v33, 4294901760
    %857 = vmatpush.msra.mxu0 %v856
    %v858 = vand.u32 %v32, 4294901760
    %859 = vmatpush.msra.mxu0 %v858
    %v860 = vand.u32 %v31, 4294901760
    %861 = vmatpush.msra.mxu0 %v860
    %v862 = vand.u32 %v30, 4294901760
    %863 = vmatpush.msra.mxu0 %v862
    %v864 = vand.u32 %v29, 4294901760
    %865 = vmatpush.msra.mxu0 %v864
    %v866 = vand.u32 %v28, 4294901760
    %867 = vmatpush.msra.mxu0 %v866
    %v868 = vand.u32 %v27, 4294901760
    %869 = vmatpush.msra.mxu0 %v868
    %v870 = vand.u32 %v26, 4294901760
    %871 = vmatpush.msra.mxu0 %v870
    %v872 = vand.u32 %v25, 4294901760
    %873 = vmatpush.msra.mxu0 %v872
    %v874 = vand.u32 %v24, 4294901760
    %875 = vmatpush.msra.mxu0 %v874
    %v876 = vand.u32 %v23, 4294901760
    %877 = vmatpush.msra.mxu0 %v876
    %v878 = vand.u32 %v22, 4294901760
    %879 = vmatpush.msra.mxu0 %v878
    %v880 = vand.u32 %v543, 4294901760
    %881 = vmatmul.f32.gmra.mxu0 %v880
    %v882 = vpop.f32.mrf.mxu0
    %v883 = vadd.f32 %v846, %v882
    %884 = vdwg.mxu0
    %v885 = vrcp.pop 31.0
    %v886 = vmul.f32 31.0, %v885
    %v887 = vsub.f32 1.0, %v886
    %v888 = vmul.f32 %v885, %v887
    %v889 = vadd.f32 %v885, %v888
    %vm890 = vweird.f32 %v885
    %v891 = vsel %vm890, %v885, %v889
    %v892 = vmul.f32 %v883, %v891
    %v893 = vrsqrt.pop %v892
    %v894 = vmul.f32 %v893, %v892
    %v895 = vmul.f32 %v894, %v893
    %v896 = vmul.f32 0.5, %v895
    %v897 = vsub.f32 1.5, %v896
    %v898 = vmul.f32 %v893, %v897
    %v899 = vmul.f32 %v892, %v898
    %vm900 = vcmp.eq.f32.partialorder %v892, inf
    %v901 = vsel %vm900, %v892, %v899
    %vm902 = vcmp.eq.f32.partialorder %v892, 0.0
    %v903 = vand.u32 %v892, 2147483648
    %v904 = vsel %vm902, %v903, %v901
    %v905 = vadd.f32 %v904, 1e-06
    %v906 = vrcp.pop %v905
    %v907 = vmul.f32 %v905, %v906
    %v908 = vsub.f32 2.0, %v907
    %v909 = vmul.f32 %v906, %v908
    %v911 = vsel %vm388, %v909, 0
    %913 = vmatpush.msra.mxu0 0.0
    %914 = vmatpush.msra.mxu0 0.0
    %915 = vmatpush.msra.mxu0 0.0
    %916 = vmatpush.msra.mxu0 0.0
    %917 = vmatpush.msra.mxu0 0.0
    %918 = vmatpush.msra.mxu0 0.0
    %919 = vmatpush.msra.mxu0 0.0
    %920 = vmatpush.msra.mxu0 0.0
    %921 = vmatpush.msra.mxu0 0.0
    %922 = vmatpush.msra.mxu0 0.0
    %923 = vmatpush.msra.mxu0 0.0
    %924 = vmatpush.msra.mxu0 0.0
    %925 = vmatpush.msra.mxu0 0.0
    %926 = vmatpush.msra.mxu0 0.0
    %927 = vmatpush.msra.mxu0 0.0
    %v928 = vand.u32 %v394, 4294901760
    %929 = vmatpush.msra.mxu0 %v928
    %v930 = vand.u32 %v911, 4294901760
    %v931 = vsub.f32 %v911, %v930
    %v932 = vand.u32 %v931, 4294901760
    %v933 = vsub.f32 %v931, %v932
    %v934 = vand.u32 %v933, 4294901760
    %935 = vmatmul.f32.gmra.mxu0 %v934
    %v936 = vpop.f32.mrf.mxu0
    %v937 = vadd.f32 0.0, %v936
    %938 = vdwg.mxu0
    %939 = vmatpush.msra.mxu0 0.0
    %940 = vmatpush.msra.mxu0 0.0
    %941 = vmatpush.msra.mxu0 0.0
    %942 = vmatpush.msra.mxu0 0.0
    %943 = vmatpush.msra.mxu0 0.0
    %944 = vmatpush.msra.mxu0 0.0
    %945 = vmatpush.msra.mxu0 0.0
    %946 = vmatpush.msra.mxu0 0.0
    %947 = vmatpush.msra.mxu0 0.0
    %948 = vmatpush.msra.mxu0 0.0
    %949 = vmatpush.msra.mxu0 0.0
    %950 = vmatpush.msra.mxu0 0.0
    %951 = vmatpush.msra.mxu0 0.0
    %952 = vmatpush.msra.mxu0 0.0
    %953 = vmatpush.msra.mxu0 0.0
    %v954 = vand.u32 %v394, 4294901760
    %v955 = vsub.f32 %v394, %v954
    %v956 = vand.u32 %v955, 4294901760
    %v957 = vsub.f32 %v955, %v956
    %v958 = vand.u32 %v957, 4294901760
    %959 = vmatpush.msra.mxu0 %v958
    %v960 = vand.u32 %v911, 4294901760
    %961 = vmatmul.f32.gmra.mxu0 %v960
    %v962 = vpop.f32.mrf.mxu0
    %v963 = vadd.f32 %v937, %v962
    %964 = vdwg.mxu0
    %965 = vmatpush.msra.mxu0 0.0
    %966 = vmatpush.msra.mxu0 0.0
    %967 = vmatpush.msra.mxu0 0.0
    %968 = vmatpush.msra.mxu0 0.0
    %969 = vmatpush.msra.mxu0 0.0
    %970 = vmatpush.msra.mxu0 0.0
    %971 = vmatpush.msra.mxu0 0.0
    %972 = vmatpush.msra.mxu0 0.0
    %973 = vmatpush.msra.mxu0 0.0
    %974 = vmatpush.msra.mxu0 0.0
    %975 = vmatpush.msra.mxu0 0.0
    %976 = vmatpush.msra.mxu0 0.0
    %977 = vmatpush.msra.mxu0 0.0
    %978 = vmatpush.msra.mxu0 0.0
    %979 = vmatpush.msra.mxu0 0.0
    %v980 = vand.u32 %v394, 4294901760
    %v981 = vsub.f32 %v394, %v980
    %982 = vmatpush.msra.mxu0 %v981
    %v983 = vand.u32 %v911, 4294901760
    %v984 = vsub.f32 %v911, %v983
    %985 = vmatmul.f32.gmra.mxu0 %v984
    %v986 = vpop.f32.mrf.mxu0
    %v987 = vadd.f32 %v963, %v986
    %988 = vdwg.mxu0
    %989 = vmatpush.msra.mxu0 0.0
    %990 = vmatpush.msra.mxu0 0.0
    %991 = vmatpush.msra.mxu0 0.0
    %992 = vmatpush.msra.mxu0 0.0
    %993 = vmatpush.msra.mxu0 0.0
    %994 = vmatpush.msra.mxu0 0.0
    %995 = vmatpush.msra.mxu0 0.0
    %996 = vmatpush.msra.mxu0 0.0
    %997 = vmatpush.msra.mxu0 0.0
    %998 = vmatpush.msra.mxu0 0.0
    %999 = vmatpush.msra.mxu0 0.0
    %1000 = vmatpush.msra.mxu0 0.0
    %1001 = vmatpush.msra.mxu0 0.0
    %1002 = vmatpush.msra.mxu0 0.0
    %1003 = vmatpush.msra.mxu0 0.0
    %v1004 = vand.u32 %v394, 4294901760
    %1005 = vmatpush.msra.mxu0 %v1004
    %v1006 = vand.u32 %v911, 4294901760
    %v1007 = vsub.f32 %v911, %v1006
    %v1008 = vand.u32 %v1007, 4294901760
    %1009 = vmatmul.f32.gmra.mxu0 %v1008
    %v1010 = vpop.f32.mrf.mxu0
    %v1011 = vadd.f32 %v987, %v1010
    %1012 = vdwg.mxu0
    %1013 = vmatpush.msra.mxu0 0.0
    %1014 = vmatpush.msra.mxu0 0.0
    %1015 = vmatpush.msra.mxu0 0.0
    %1016 = vmatpush.msra.mxu0 0.0
    %1017 = vmatpush.msra.mxu0 0.0
    %1018 = vmatpush.msra.mxu0 0.0
    %1019 = vmatpush.msra.mxu0 0.0
    %1020 = vmatpush.msra.mxu0 0.0
    %1021 = vmatpush.msra.mxu0 0.0
    %1022 = vmatpush.msra.mxu0 0.0
    %1023 = vmatpush.msra.mxu0 0.0
    %1024 = vmatpush.msra.mxu0 0.0
    %1025 = vmatpush.msra.mxu0 0.0
    %1026 = vmatpush.msra.mxu0 0.0
    %1027 = vmatpush.msra.mxu0 0.0
    %v1028 = vand.u32 %v394, 4294901760
    %v1029 = vsub.f32 %v394, %v1028
    %v1030 = vand.u32 %v1029, 4294901760
    %1031 = vmatpush.msra.mxu0 %v1030
    %v1032 = vand.u32 %v911, 4294901760
    %1033 = vmatmul.f32.gmra.mxu0 %v1032
    %v1034 = vpop.f32.mrf.mxu0
    %v1035 = vadd.f32 %v1011, %v1034
    %1036 = vdwg.mxu0
    %1037 = vmatpush.msra.mxu0 0.0
    %1038 = vmatpush.msra.mxu0 0.0
    %1039 = vmatpush.msra.mxu0 0.0
    %1040 = vmatpush.msra.mxu0 0.0
    %1041 = vmatpush.msra.mxu0 0.0
    %1042 = vmatpush.msra.mxu0 0.0
    %1043 = vmatpush.msra.mxu0 0.0
    %1044 = vmatpush.msra.mxu0 0.0
    %1045 = vmatpush.msra.mxu0 0.0
    %1046 = vmatpush.msra.mxu0 0.0
    %1047 = vmatpush.msra.mxu0 0.0
    %1048 = vmatpush.msra.mxu0 0.0
    %1049 = vmatpush.msra.mxu0 0.0
    %1050 = vmatpush.msra.mxu0 0.0
    %1051 = vmatpush.msra.mxu0 0.0
    %v1052 = vand.u32 %v394, 4294901760
    %1053 = vmatpush.msra.mxu0 %v1052
    %v1054 = vand.u32 %v911, 4294901760
    %1055 = vmatmul.f32.gmra.mxu0 %v1054
    %v1056 = vpop.f32.mrf.mxu0
    %v1057 = vadd.f32 %v1035, %v1056
    %1058 = vdwg.mxu0
    %v1059 = vld [vmem:[%s1] sm:$0x1]
    %v1060 = vmul.f32 %v542, %v1057
    %v1062 = vperm.slane %v1059, 0
    %v1064 = vmul.f32 %v1062, %v1060
    %v1065 = vld [vmem:[%s2] sm:$0x1]
    %v1067 = vperm.slane %v1065, 0
    %v1069 = vadd.f32 %v1064, %v1067
    %1070 = vst [vmem:[#allocation2] sm:$0xf] %v1069
    // Predicated region
    $region22: #{tpu_custom_call.1} parent=1 // pred_check
      _
    $region23: #{tpu_custom_call.1} parent=1 // pred_check_branch
      %1072 = sbr.rel (0) target = $region25
    $region24: #{tpu_custom_call.1} parent=1 // pred_region
      %1074 = vsyncadd [#allocation3], 0
      %s1076 = sshll.u32 [#allocation2], 4
      %s1077 = int_to_ptr.vmem [resolvable:$true] %s1076
      %s1078 = sshll.u32 %s5, 4
      %s1079 = int_to_ptr.hbm [resolvable:$true] %s1078
      %1081 = dma.vmem_to_hbm [thread:$0]  %s1077, 64, %s1079, [#allocation3]
    $region25: #{tpu_custom_call.1} parent=1 // pred_fallthru
      _
    // Predicated region
    $region26: #{tpu_custom_call.1} parent=1 // pred_check
      _
    $region27: #{tpu_custom_call.1} parent=1 // pred_check_branch
      %1083 = sbr.rel (0) target = $region29
    $region28: #{tpu_custom_call.1} parent=1 // pred_region
      %1085 = dma.done [#allocation3], 64
    $region29: #{tpu_custom_call.1} parent=1 // pred_fallthru
      _
    %1086 = vsyncpa [#allocation3], 1

</llo_original>
